<compile_context>
chip_gen: v5e
topology: v5e:2x2
jax: 0.10.0
libtpu: 0.0.40
codegen_flags: <defaults>
</compile_context>

<pallas_src>
import jax
import jax.numpy as jnp
from jax.experimental import pallas as pl
from jax.experimental.pallas import tpu as pltpu


def _tok_pos_embed_kernel(ids_ref, tok_ref, pos_ref, o_ref):
    """One grid step -> one (1, Ts, E) output tile.

    ids_ref: (1, Ts, 1) int32  token ids for this tile
    tok_ref: (V, E)            token embedding table, VMEM-resident
    pos_ref: (S, E)            position embedding table, VMEM-resident
    o_ref:   (1, Ts, E)        output tile
    """
    ts = o_ref.shape[1]
    vocab = tok_ref.shape[0]

    ids = ids_ref[0]  # (Ts, 1) int32

    # Gather-as-matmul: one_hot(ids) @ table.  Dense and MXU-friendly; avoids
    # per-row DMA descriptors and any reliance on general gather lowering.
    onehot = (jax.lax.broadcasted_iota(jnp.int32, (ts, vocab), 1) == ids)
    tok = jnp.dot(onehot.astype(tok_ref.dtype), tok_ref[...],
                  preferred_element_type=jnp.float32)            # (Ts, E) f32

    # Slice the Ts position rows for this seq tile out of the resident table.
    start = pl.multiple_of(pl.program_id(1) * ts, ts)
    pos = pos_ref[pl.ds(start, ts), :]                            # (Ts, E)

    o_ref[0] = (tok + pos.astype(jnp.float32)).astype(o_ref.dtype)


def _pick_seq_tile(seq_len, max_tile=512):
    """Largest power-of-two tile (>=8, <=max_tile) dividing seq_len, else full seq."""
    for cand in (1024, 512, 256, 128, 64, 32, 16, 8):
        if cand <= max_tile and cand <= seq_len and seq_len % cand == 0:
            return cand
    return seq_len  # full-extent block is always a legal block shape


def token_and_position_embedding(token_ids, token_table, pos_table, *, seq_tile=512):
    """token_ids: (B, S) int; token_table: (V, E); pos_table: (max_len, E)."""
    B, S = token_ids.shape
    V, E = token_table.shape
    max_len = pos_table.shape[0]
    assert S <= max_len, "sequence length must not exceed max_len"

    pos = pos_table[:S]                      # rows the forward actually adds
    ts = _pick_seq_tile(S, seq_tile)
    grid = (B, S // ts)

    ids3 = token_ids.astype(jnp.int32).reshape(B, S, 1)

    # VMEM budget: resident tables + double-buffered id/output tiles + headroom.
    itemsize = jnp.dtype(token_table.dtype).itemsize
    resident_bytes = (V * E + S * E) * itemsize
    tile_bytes = 2 * ts * (E * 4 + E * itemsize + 128)
    vmem_limit = int(min(max(2 * resident_bytes + tile_bytes, 32 * 1024 * 1024),
                         64 * 1024 * 1024))

    grid_spec = pltpu.PrefetchScalarGridSpec(
        num_scalar_prefetch=0,
        grid=grid,
        in_specs=[
            # Token-id tile for this (batch, seq-tile) grid point.
            pl.BlockSpec((1, ts, 1), lambda b, s: (b, s, 0)),
            # Full token table, constant index_map -> DMA'd into VMEM once.
            pl.BlockSpec((V, E), lambda b, s: (0, 0)),
            # Full (used) position table, constant index_map -> resident.
            pl.BlockSpec((S, E), lambda b, s: (0, 0)),
        ],
        out_specs=pl.BlockSpec((1, ts, E), lambda b, s: (b, s, 0)),
    )

    return pl.pallas_call(
        _tok_pos_embed_kernel,
        grid_spec=grid_spec,
        out_shape=jax.ShapeDtypeStruct((B, S, E), token_table.dtype),
        compiler_params=pltpu.CompilerParams(
            dimension_semantics=("parallel", "parallel"),
            vmem_limit_bytes=vmem_limit,
        ),
    )(ids3, token_table, pos)


if __name__ == "__main__":
    # Small shapes consistent with the module: batch=2, max_len=seq=8,
    # vocab_size=32, embed_dim=128 (lane-aligned).
    B, max_len, vocab_size, embed_dim = 2, 8, 32, 128

    key = jax.random.PRNGKey(0)
    k_tok, k_pos, k_ids = jax.random.split(key, 3)

    # nn.Embedding default init ~ N(0, 1); padding_idx=0 => row 0 is zeros.
    token_table = jax.random.normal(k_tok, (vocab_size, embed_dim), jnp.float32)
    token_table = token_table.at[0].set(0.0)
    pos_table = jax.random.normal(k_pos, (max_len, embed_dim), jnp.float32)

    token_ids = jax.random.randint(k_ids, (B, max_len), 0, vocab_size, jnp.int32)
    token_ids = token_ids.at[0, 0].set(0)  # exercise the padding_idx row

    out = token_and_position_embedding(token_ids, token_table, pos_table)
    out = jax.block_until_ready(out)

    # Pure-JAX reference of the PyTorch forward.
    ref = token_table[token_ids] + pos_table[None, :max_len, :]
    assert out.shape == (B, max_len, embed_dim)
    assert jnp.allclose(out, ref, atol=1e-5), float(jnp.max(jnp.abs(out - ref)))

    print("KERNEL_OK")
</pallas_src>

<mosaic_0001>
module attributes {stable_mosaic.version = 11 : i64} {
  func.func @_tok_pos_embed_kernel(%arg0: i32, %arg1: i32, %arg2: memref<1x8x1xi32, #tpu.memory_space<vmem>>, %arg3: memref<32x128xf32, #tpu.memory_space<vmem>>, %arg4: memref<8x128xf32, #tpu.memory_space<vmem>>, %arg5: memref<1x8x128xf32, #tpu.memory_space<vmem>>) attributes {dimension_semantics = [#tpu.dimension_semantics<parallel>, #tpu.dimension_semantics<parallel>], iteration_bounds = array<i64: 2, 1>, scalar_prefetch = 0 : i64, scratch_operands = 0 : i64, tpu.core_type = #tpu.core_type<tc>, window_params = [{transform_indices = @transform_0, window_bounds = array<i64: 1, 8, 1>}, {pipeline_mode = #tpu.pipeline_mode<synchronous>, transform_indices = @transform_1, window_bounds = array<i64: 32, 128>}, {pipeline_mode = #tpu.pipeline_mode<synchronous>, transform_indices = @transform_2, window_bounds = array<i64: 8, 128>}, {transform_indices = @transform_3, window_bounds = array<i64: 1, 8, 128>}]} {
    %c0 = arith.constant 0 : index
    %c0_0 = arith.constant 0 : index
    %c0_1 = arith.constant 0 : index
    %0 = vector.load %arg2[%c0, %c0_0, %c0_1] : memref<1x8x1xi32, #tpu.memory_space<vmem>>, vector<1x8x1xi32>
    %1 = vector.shape_cast %0 : vector<1x8x1xi32> to vector<8x1xi32>
    %2 = tpu.iota {dimensions = array<i32: 1>} : vector<8x32xi32>
    %3 = vector.broadcast %1 : vector<8x1xi32> to vector<8x32xi32>
    %4 = arith.cmpi eq, %2, %3 : vector<8x32xi32>
    %5 = arith.extui %4 : vector<8x32xi1> to vector<8x32xi32>
    %6 = arith.sitofp %5 : vector<8x32xi32> to vector<8x32xf32>
    %c0_2 = arith.constant 0 : index
    %c0_3 = arith.constant 0 : index
    %7 = vector.load %arg3[%c0_2, %c0_3] : memref<32x128xf32, #tpu.memory_space<vmem>>, vector<32x128xf32>
    %cst = arith.constant dense<0.000000e+00> : vector<8x128xf32>
    %8 = tpu.matmul %6, %7, %cst {dimension_numbers = #tpu.dot_dimension_numbers<[1], [0], [0], [1], [0, 0, 1, 1], [], []>} : vector<8x32xf32>, vector<32x128xf32>, vector<8x128xf32> -> vector<8x128xf32>
    %c8_i32 = arith.constant 8 : i32
    %9 = arith.muli %arg1, %c8_i32 : i32
    %10 = tpu.assume_multiple %9, 8 : i32
    %11 = arith.index_cast %10 : i32 to index
    %c0_4 = arith.constant 0 : index
    %12 = vector.load %arg4[%11, %c0_4] : memref<8x128xf32, #tpu.memory_space<vmem>>, vector<8x128xf32>
    %13 = arith.addf %8, %12 : vector<8x128xf32>
    %c0_5 = arith.constant 0 : index
    %c0_6 = arith.constant 0 : index
    %c0_7 = arith.constant 0 : index
    %14 = vector.load %arg5[%c0_5, %c0_6, %c0_7] : memref<1x8x128xf32, #tpu.memory_space<vmem>>, vector<1x8x128xf32>
    %15 = vector.shape_cast %14 : vector<1x8x128xf32> to vector<8x128xf32>
    %16 = vector.shape_cast %13 : vector<8x128xf32> to vector<1x8x128xf32>
    tpu.vector_store %arg5[%c0_5, %c0_6, %c0_7], %16 {strides = array<i32>} : memref<1x8x128xf32, #tpu.memory_space<vmem>>, vector<1x8x128xf32>,
    return
  }
  func.func @transform_0(%arg0: i32, %arg1: i32) -> (i32, i32, i32) {
    %c0_i32 = arith.constant 0 : i32
    %c0_i32_0 = arith.constant 0 : i32
    return %arg0, %arg1, %c0_i32 : i32, i32, i32
  }
  func.func @transform_1(%arg0: i32, %arg1: i32) -> (i32, i32) {
    %c0_i32 = arith.constant 0 : i32
    %c0_i32_0 = arith.constant 0 : i32
    %c0_i32_1 = arith.constant 0 : i32
    return %c0_i32, %c0_i32_0 : i32, i32
  }
  func.func @transform_2(%arg0: i32, %arg1: i32) -> (i32, i32) {
    %c0_i32 = arith.constant 0 : i32
    %c0_i32_0 = arith.constant 0 : i32
    %c0_i32_1 = arith.constant 0 : i32
    return %c0_i32, %c0_i32_0 : i32, i32
  }
  func.func @transform_3(%arg0: i32, %arg1: i32) -> (i32, i32, i32) {
    %c0_i32 = arith.constant 0 : i32
    %c0_i32_0 = arith.constant 0 : i32
    return %arg0, %arg1, %c0_i32 : i32, i32, i32
  }
}

</mosaic_0001>

<llo_original>
// kernel: tpu_custom_call.1
$region0: #{tpu_custom_call.1}
  #allocation0 [shape = 'u32[]', space=smem, size = 0x4, offset = 0x4, fixed_abs, tag = 'smem constant byte address 0x4 - core index']
  #allocation1 [shape = 'u32[72,128]{1,0:T(1,128)}', space=vmem, size = 0x9000, scoped, tag = 'internal scratch']
  %s0 = inlined_call_operand.vmem [shape: s32[2,8,1], index: 0, kind: input, shape index: {}]
  %s1 = inlined_call_operand.hbm [shape: f32[32,128], index: 1, kind: input, shape index: {}]
  %s2 = inlined_call_operand.vmem [shape: f32[8,128], index: 2, kind: input, shape index: {}]
  %s3 = inlined_call_operand.hbm [shape: f32[2,8,128], index: 3, kind: output, shape index: {}]
  %s4 = sld [smem:[#allocation0]]
  $region49: #{tpu_custom_call.1} parent=0
    _
  %s6 = ssub.s32 1, %s4
  %s7 = scalar_select 0, %s6, %s4
  $region1: #{tpu_custom_call.1} parent=0
    #allocation2 [shape = 'u8[16384]{0}', space=vmem, size = 0x4000, scoped, tag = 'input window, operand 1, single buffered']
    #allocation3 [shape = 's32[2]{0}', space=sflag, size = 0x8, scoped, tag = 'scoped memory for tpu_custom_call.1']
    #allocation4 [shape = 's32[2]{0}', space=sflag, size = 0x8, scoped, tag = 'scoped memory for tpu_custom_call.1']
    #allocation5 [shape = 'u8[8192]{0}', space=vmem, size = 0x2000, scoped, tag = 'output window, operand 0']
    %8 = vsyncpa [#allocation3], 0
    %9 = vsyncpa [#allocation4], 0
    %s10 = scalar_lea.sflag [#allocation4], 1
    %11 = vsyncpa %s10, 0
    loop: start=0, step=1, limit=4
    $region2: #{tpu_custom_call.1} parent=1 // loop_pre_header
      _
    $region3: #{tpu_custom_call.1} parent=1 // loop_header
      %s13 = sphi 0, %s17
      %p14 = scmp.ge.s32.totalorder %s13, 4
      %s20 = sphi 0, %s32
      %s21 = sphi 0, %s28
      %s22 = sphi 0, %s20
      %s23 = sphi 0, %s21
      %s24 = sphi 0, %s22
      %s25 = sphi 0, %s23
      %s37 = sphi 0, %s39
      %s40 = sphi 0, %s37
      %s41 = sphi 0, %s40
      %s57 = sphi 0, %s41
      %s61 = sphi 0, %s61
      %s63 = sphi 0, %s61
      %s64 = sphi 0, %s63
      %s78 = sphi 0, %s64
      %s82 = sphi 0, %s82
      %s84 = sphi 0, %s82
      %s85 = sphi 0, %s84
      %s99 = sphi 0, %s85
      %s107 = sphi 0, %s109
      %s110 = sphi 0, %s107
      %s111 = sphi 0, %s110
      %s127 = sphi 0, %s111
    $region4: #{tpu_custom_call.1} parent=1 // loop_header_branch
      %16 = sbr.rel (%p14) target = $region8
    $region5: #{tpu_custom_call.1} parent=1 // loop_body
      %s18 = ssub.s32 %s13, 1
      %s19 = ssub.s32 %s13, 2
      %s26 = sadd.s32 1, %s21
      %p27 = scmp.ge.s32.totalorder %s26, 1
      %s28 = scalar_select %p27, 0, %s26
      %s29 = sadd.s32 1, %s20
      %s30 = scalar_select %p27, %s29, %s20
      %p31 = scmp.ge.s32.totalorder %s30, 2
      %s32 = scalar_select %p31, 0, %s30
      %s33 = ssub.s32 %s20, %s32
      %s34 = ssub.s32 %s21, %s28
      %s35 = sor.u32 %s33, %s34
      %p36 = scmp.eq.s32.totalorder %s35, 0
      %s38 = sadd.s32 %s37, 1
      %s39 = scalar_select %p36, %s37, %s38
      %p42 = pneg %p36
      %p43 = scmp.eq.s32.totalorder %s13, 1
      %p44 = por %p42, %p43
      %p45 = scmp.ne.s32.totalorder %s37, %s40
      %p46 = scmp.eq.s32.totalorder %s13, 0
      %p47 = por %p45, %p46
      %p48 = scmp.ne.s32.totalorder %s37, %s40
      %p49 = scmp.eq.s32.totalorder %s18, 1
      %p50 = por %p48, %p49
      %p51 = scmp.ne.s32.totalorder %s40, %s41
      %p52 = scmp.eq.s32.totalorder %s18, 0
      %p53 = por %p51, %p52
      %p54 = scmp.ne.s32.totalorder %s40, %s41
      %p55 = scmp.eq.s32.totalorder %s19, 1
      %p56 = por %p54, %p55
      %p58 = scmp.ne.s32.totalorder %s41, %s57
      %p59 = scmp.eq.s32.totalorder %s19, 0
      %p60 = por %p58, %p59
      %s62 = sadd.s32 %s61, 1
      %p65 = scmp.eq.s32.totalorder %s13, 1
      %p66 = scmp.ne.s32.totalorder %s61, %s63
      %p67 = scmp.eq.s32.totalorder %s13, 0
      %p68 = por %p66, %p67
      %p69 = scmp.ne.s32.totalorder %s61, %s63
      %p70 = scmp.eq.s32.totalorder %s18, 1
      %p71 = por %p69, %p70
      %p72 = scmp.ne.s32.totalorder %s63, %s64
      %p73 = scmp.eq.s32.totalorder %s18, 0
      %p74 = por %p72, %p73
      %p75 = scmp.ne.s32.totalorder %s63, %s64
      %p76 = scmp.eq.s32.totalorder %s19, 1
      %p77 = por %p75, %p76
      %p79 = scmp.ne.s32.totalorder %s64, %s78
      %p80 = scmp.eq.s32.totalorder %s19, 0
      %p81 = por %p79, %p80
      %s83 = sadd.s32 %s82, 1
      %p86 = scmp.eq.s32.totalorder %s13, 1
      %p87 = scmp.ne.s32.totalorder %s82, %s84
      %p88 = scmp.eq.s32.totalorder %s13, 0
      %p89 = por %p87, %p88
      %p90 = scmp.ne.s32.totalorder %s82, %s84
      %p91 = scmp.eq.s32.totalorder %s18, 1
      %p92 = por %p90, %p91
      %p93 = scmp.ne.s32.totalorder %s84, %s85
      %p94 = scmp.eq.s32.totalorder %s18, 0
      %p95 = por %p93, %p94
      %p96 = scmp.ne.s32.totalorder %s84, %s85
      %p97 = scmp.eq.s32.totalorder %s19, 1
      %p98 = por %p96, %p97
      %p100 = scmp.ne.s32.totalorder %s85, %s99
      %p101 = scmp.eq.s32.totalorder %s19, 0
      %p102 = por %p100, %p101
      %s103 = ssub.s32 %s20, %s32
      %s104 = ssub.s32 %s21, %s28
      %s105 = sor.u32 %s103, %s104
      %p106 = scmp.eq.s32.totalorder %s105, 0
      %s108 = sadd.s32 %s107, 1
      %s109 = scalar_select %p106, %s107, %s108
      %p112 = pneg %p106
      %p113 = scmp.eq.s32.totalorder %s13, 1
      %p114 = por %p112, %p113
      %p115 = scmp.ne.s32.totalorder %s107, %s110
      %p116 = scmp.eq.s32.totalorder %s13, 0
      %p117 = por %p115, %p116
      %p118 = scmp.ne.s32.totalorder %s107, %s110
      %p119 = scmp.eq.s32.totalorder %s18, 1
      %p120 = por %p118, %p119
      %p121 = scmp.ne.s32.totalorder %s110, %s111
      %p122 = scmp.eq.s32.totalorder %s18, 0
      %p123 = por %p121, %p122
      %p124 = scmp.ne.s32.totalorder %s110, %s111
      %p125 = scmp.eq.s32.totalorder %s19, 1
      %p126 = por %p124, %p125
      %p128 = scmp.ne.s32.totalorder %s111, %s127
      %p129 = scmp.eq.s32.totalorder %s19, 0
      %p130 = por %p128, %p129
      %p131 = scmp.le.s32.totalorder 1, %s13
      %p132 = scmp.lt.s32.totalorder %s13, 3
      %p133 = pnand %p131, %p132
      %p134 = pneg %p133
      // Predicated region
      $region9: #{tpu_custom_call.1} parent=5 // pred_check
        _
      $region10: #{tpu_custom_call.1} parent=5 // pred_check_branch
        %136 = sbr.rel (%p133) target = $region12
      $region11: #{tpu_custom_call.1} parent=5 // pred_region
        %s137 = ssub.s32 %s13, 1
        // Predicated region
        $region13: #{tpu_custom_call.1} parent=11 // pred_check
          %p138 = pneg %p74
        $region14: #{tpu_custom_call.1} parent=11 // pred_check_branch
          %140 = sbr.rel (%p138) target = $region16
        $region15: #{tpu_custom_call.1} parent=11 // pred_region
          %142 = vsyncadd [#allocation3], 0
          %s143 = sshll.u32 %s1, 4
          %s144 = int_to_ptr.hbm [resolvable:$true] %s143
          %s145 = sshll.u32 [#allocation2], 4
          %s146 = int_to_ptr.vmem [resolvable:$true] %s145
          %151 = dma.hbm_to_vmem [thread:$0]  %s144, 512, %s146, [#allocation3], 128, 128, 8
        $region16: #{tpu_custom_call.1} parent=11 // pred_fallthru
          _
        // Predicated region
        $region17: #{tpu_custom_call.1} parent=11 // pred_check
          %p152 = pneg %p95
        $region18: #{tpu_custom_call.1} parent=11 // pred_check_branch
          %154 = sbr.rel (%p152) target = $region20
        $region19: #{tpu_custom_call.1} parent=11 // pred_region
          _
        $region20: #{tpu_custom_call.1} parent=11 // pred_fallthru
          _
      $region12: #{tpu_custom_call.1} parent=5 // pred_fallthru
        _
      %p155 = scmp.lt.s32.totalorder %s13, 2
      // Predicated region
      $region21: #{tpu_custom_call.1} parent=5 // pred_check
        %p156 = pneg %p155
      $region22: #{tpu_custom_call.1} parent=5 // pred_check_branch
        %158 = sbr.rel (%p156) target = $region24
      $region23: #{tpu_custom_call.1} parent=5 // pred_region
        // Predicated region
        $region25: #{tpu_custom_call.1} parent=23 // pred_check
          %p159 = pneg %p47
        $region26: #{tpu_custom_call.1} parent=23 // pred_check_branch
          %161 = sbr.rel (%p159) target = $region28
        $region27: #{tpu_custom_call.1} parent=23 // pred_region
          %p162 = scmp.lt.s32.totalorder %s20, 1
          %s163 = scalar_select %p162, %s20, 1
          %p164 = scmp.lt.s32.totalorder %s21, 0
          %s165 = scalar_select %p164, %s21, 0
          %s166 = sadd.s32 %s165, %s163
          %s167 = smul.addr %s166, 8
          %s168 = scalar_lea.vmem %s0, %s167
        $region28: #{tpu_custom_call.1} parent=23 // pred_fallthru
          _
      $region24: #{tpu_custom_call.1} parent=5 // pred_fallthru
        _
      %p169 = scmp.le.s32.totalorder 1, %s13
      %p170 = scmp.lt.s32.totalorder %s13, 3
      %p171 = pnand %p169, %p170
      %p172 = pneg %p171
      // Predicated region
      $region29: #{tpu_custom_call.1} parent=5 // pred_check
        _
      $region30: #{tpu_custom_call.1} parent=5 // pred_check_branch
        %174 = sbr.rel (%p171) target = $region32
      $region31: #{tpu_custom_call.1} parent=5 // pred_region
        %s175 = ssub.s32 %s13, 1
        // Predicated region
        $region33: #{tpu_custom_call.1} parent=31 // pred_check
          %p176 = pneg %p74
        $region34: #{tpu_custom_call.1} parent=31 // pred_check_branch
          %178 = sbr.rel (%p176) target = $region36
        $region35: #{tpu_custom_call.1} parent=31 // pred_region
          %180 = dma.done [#allocation3], 512
        $region36: #{tpu_custom_call.1} parent=31 // pred_fallthru
          _
        %p181 = scmp.lt.s32.totalorder %s22, 1
        %s182 = scalar_select %p181, %s22, 1
        %p183 = scmp.lt.s32.totalorder %s23, 0
        %s184 = scalar_select %p183, %s23, 0
        %s185 = sadd.s32 %s184, %s182
        %s186 = smul.addr %s185, 8
        %s187 = scalar_lea.vmem %s0, %s186
        %p188 = pneg %p53
        %p189 = pneg %p50
        %p190 = pneg %p74
        %p191 = pneg %p71
        %p192 = pneg %p95
        %p193 = pneg %p92
        %p194 = pneg %p123
        %p195 = pneg %p120
        %s196 = sand.u32 %s110, 1
        %s197 = scalar_lea.sflag [#allocation4], %s196
        %s198 = sand.u32 %s110, 1
        %s199 = smul.addr %s198, 8
        %s200 = scalar_lea.vmem [#allocation5], %s199
        %p201 = scmp.lt.s32.totalorder %s22, 1
        %s202 = scalar_select %p201, %s22, 1
        %p203 = scmp.lt.s32.totalorder %s23, 0
        %s204 = scalar_select %p203, %s23, 0
        %s205 = sadd.s32 %s204, %s202
        %s206 = smul.addr %s205, 8
        %s207 = scalar_lea.vmem %s0, %s206
        %v208 = vld [vmem:[%s207] sm:$0xff]
        %v209 = vlaneseq
        %v210 = vand.u32 %v209, 127
        %211 = vset.pattern.permute.xlu0 0
        %212 = vperm.xlu0 %211, %v208
        %v213 = vpop.permute.xlu0 %212
        %vm214 = vcmp.eq.s32.totalorder %v210, %v213
        %v215 = vsel %vm214, 1, 0
        %v216 = vcvt.s32.f32 %v215
        %v217 = vld [vmem:[#allocation2] sm:$0xff]
        %v218 = vld [vmem:[#allocation2 + $0x8] sm:$0xff]
        %v219 = vld [vmem:[#allocation2 + $0x10] sm:$0xff]
        %v220 = vld [vmem:[#allocation2 + $0x18] sm:$0xff]
        %s221 = smul.u32 %s23, 8
        %s222 = scalar_lea.vmem %s2, %s221
        %v223 = vld [vmem:[%s222] sm:$0xff]
        %vm224 = vcmask 261120
        %v226 = vsel %vm224, %v216, 0
        %228 = vmatpush.msra.mxu0 0.0
        %229 = vmatpush.msra.mxu0 0.0
        %230 = vmatpush.msra.mxu0 0.0
        %231 = vmatpush.msra.mxu0 0.0
        %232 = vmatpush.msra.mxu0 0.0
        %233 = vmatpush.msra.mxu0 0.0
        %234 = vmatpush.msra.mxu0 0.0
        %235 = vmatpush.msra.mxu0 0.0
        %236 = vmatpush.msra.mxu0 0.0
        %237 = vmatpush.msra.mxu0 0.0
        %238 = vmatpush.msra.mxu0 0.0
        %239 = vmatpush.msra.mxu0 0.0
        %240 = vmatpush.msra.mxu0 %v220
        %241 = vmatpush.msra.mxu0 %v219
        %242 = vmatpush.msra.mxu0 %v218
        %243 = vmatpush.msra.mxu0 %v217
        %244 = vmatmul.f32.gmra.mxu0 %v226
        %v245 = vpop.f32.mrf.mxu0
        %v246 = vadd.f32 %v223, %v245
        %247 = vdwg.mxu0
        %248 = vst [vmem:[%s200] sm:$0xff] %v246
        %s249 = sand.u32 %s110, 1
        %s250 = scalar_lea.sflag [#allocation4], %s249
        %s251 = sand.u32 %s110, 1
        %s252 = smul.addr %s251, 8
        %s253 = scalar_lea.vmem [#allocation5], %s252
        // Predicated region
        $region37: #{tpu_custom_call.1} parent=31 // pred_check
          %p254 = pneg %p120
        $region38: #{tpu_custom_call.1} parent=31 // pred_check_branch
          %256 = sbr.rel (%p254) target = $region40
        $region39: #{tpu_custom_call.1} parent=31 // pred_region
          %258 = vsyncadd %s250, 0
          %s259 = sadd.s32 %s23, %s22
          %s260 = smul.addr %s259, 8
          %s261 = scalar_lea.hbm %s3, %s260
          %s263 = sshll.u32 %s253, 4
          %s264 = int_to_ptr.vmem [resolvable:$true] %s263
          %s265 = sshll.u32 %s261, 4
          %s266 = int_to_ptr.hbm [resolvable:$true] %s265
          %268 = dma.vmem_to_hbm [thread:$0]  %s264, 128, %s266, %s250
        $region40: #{tpu_custom_call.1} parent=31 // pred_fallthru
          _
      $region32: #{tpu_custom_call.1} parent=5 // pred_fallthru
        _
      %p269 = scmp.le.s32.totalorder 2, %s13
      // Predicated region
      $region41: #{tpu_custom_call.1} parent=5 // pred_check
        %p270 = pneg %p269
      $region42: #{tpu_custom_call.1} parent=5 // pred_check_branch
        %272 = sbr.rel (%p270) target = $region44
      $region43: #{tpu_custom_call.1} parent=5 // pred_region
        %s273 = ssub.s32 %s13, 2
        // Predicated region
        $region45: #{tpu_custom_call.1} parent=43 // pred_check
          %p274 = pneg %p126
        $region46: #{tpu_custom_call.1} parent=43 // pred_check_branch
          %276 = sbr.rel (%p274) target = $region48
        $region47: #{tpu_custom_call.1} parent=43 // pred_region
          %s277 = sand.u32 %s111, 1
          %s278 = scalar_lea.sflag [#allocation4], %s277
          %s279 = sand.u32 %s111, 1
          %s280 = smul.addr %s279, 8
          %s281 = scalar_lea.vmem [#allocation5], %s280
          %283 = dma.done %s278, 128
        $region48: #{tpu_custom_call.1} parent=43 // pred_fallthru
          _
      $region44: #{tpu_custom_call.1} parent=5 // pred_fallthru
        _
    $region6: #{tpu_custom_call.1} parent=1 // loop_footer
      %s17 = sadd.s32 1, %s13
    $region7: #{tpu_custom_call.1} parent=1 // loop_footer_branch
      %12 = sbr.rel target = $region3
    $region8: #{tpu_custom_call.1} parent=1 // loop_exit
      _
    %284 = vsyncpa [#allocation3], 1
    %s285 = scalar_lea.sflag [#allocation3], 1
    %286 = vsyncpa %s285, 1
    %287 = vsyncpa [#allocation4], 1
    %s288 = scalar_lea.sflag [#allocation4], 1
    %289 = vsyncpa %s288, 1

</llo_original>
